<compile_context>
chip_gen: v7x
topology: tpu7x:2x2x1
jax: 0.10.0
libtpu: 0.0.40
codegen_flags: <defaults>
</compile_context>

<pallas_src>
import math
import numpy as np
import jax
import jax.numpy as jnp
from jax import lax
from jax.experimental import pallas as pl
from jax.experimental.pallas import tpu as pltpu

D_MODEL = 32
LN_EPS = 1e-6       # nn.LayerNorm(eps=1e-06) in the module
LANE = 128          # TPU lane width; class dimension is padded to a multiple of this


def _vmem_spec():
    # Full-array block resident in VMEM (no grid -> no pipelining/double-buffering).
    return pl.BlockSpec(memory_space=pltpu.MemorySpace.VMEM)


# ----------------------------- kernels ---------------------------------------
def _head_global_kernel(x_ref, w_t_ref, b_ref, out_ref):
    # mode == 'global': mean over the sequence axis, then Linear (padded to 128 lanes).
    x = x_ref[...]                                      # (B, S, D)
    pooled = jnp.sum(x, axis=1) * (1.0 / x.shape[1])    # (B, D)
    out_ref[...] = (jnp.dot(pooled, w_t_ref[...],
                            preferred_element_type=jnp.float32) + b_ref[...])


def _head_class_kernel(x_ref, g_ref, be_ref, w_t_ref, b_ref, out_ref):
    # mode == 'class': LayerNorm(token 0) then Linear.  x_ref is (B, 1, D) --
    # only token 0 was DMA'd; LayerNorm is per-token so this is exact.
    x0 = x_ref[:, 0, :]                                 # (B, D)
    mean = jnp.mean(x0, axis=-1, keepdims=True)
    var = jnp.mean((x0 - mean) ** 2, axis=-1, keepdims=True)   # biased (PyTorch)
    xn = (x0 - mean) * lax.rsqrt(var + LN_EPS) * g_ref[...] + be_ref[...]
    out_ref[...] = (jnp.dot(xn, w_t_ref[...],
                            preferred_element_type=jnp.float32) + b_ref[...])


def _head_token_kernel(x_ref, w_t_ref, b_ref, out_ref):
    # default path (mode neither 'global' nor 'class'): Linear on every token.
    B, S, D = x_ref.shape
    # Layout-free reshape while S is a multiple of the f32 sublane tile (8);
    # otherwise it becomes a VMEM copy (still correct, just slower).
    x2 = x_ref[...].reshape(B * S, D)
    y = jnp.dot(x2, w_t_ref[...], preferred_element_type=jnp.float32) + b_ref[...]
    out_ref[...] = y.reshape(B, S, -1)


# ------------------------ one-time parameter prep -----------------------------
def prepare_params(params):
    """Pre-transpose and lane-pad the linear layer; reshape LayerNorm affine.

    Done once, outside the per-call hot path. Returns (prepped_params, num_classes).
    """
    w = params["mlp_weight"]                            # (C, D) -- PyTorch layout
    b = params["mlp_bias"]                              # (C,)
    C, D = w.shape
    c_pad = max(LANE, ((C + LANE - 1) // LANE) * LANE)
    w_t_pad = jnp.zeros((D, c_pad), jnp.float32).at[:, :C].set(w.T)
    b_pad = jnp.zeros((1, c_pad), jnp.float32).at[:, :C].set(b)
    prepped = {
        "w_t_pad": w_t_pad,                             # (D, 128k), lane-dense
        "b_pad": b_pad,                                 # (1, 128k)
        "norm_weight": params["norm_weight"].reshape(1, -1),   # (1, D)
        "norm_bias": params["norm_bias"].reshape(1, -1),       # (1, D)
    }
    return prepped, C


# ----------------------------- wrapper ----------------------------------------
def _head_forward_impl(x, p, mode, num_classes):
    """x: (B, S, D) float32.  Returns (B, C) for 'global'/'class', else (B, S, C)."""
    B, S, D = x.shape
    w_t, b = p["w_t_pad"], p["b_pad"]
    c_pad = w_t.shape[1]

    if mode == "global":
        out = pl.pallas_call(
            _head_global_kernel,
            out_shape=jax.ShapeDtypeStruct((B, c_pad), jnp.float32),
            in_specs=[_vmem_spec()] * 3,
            out_specs=_vmem_spec(),
        )(x, w_t, b)
        return out[:, :num_classes]

    if mode == "class":
        x0 = x[:, :1, :]                                # (B, 1, D): DMA only token 0
        out = pl.pallas_call(
            _head_class_kernel,
            out_shape=jax.ShapeDtypeStruct((B, c_pad), jnp.float32),
            in_specs=[_vmem_spec()] * 5,
            out_specs=_vmem_spec(),
        )(x0, p["norm_weight"], p["norm_bias"], w_t, b)
        return out[:, :num_classes]

    out = pl.pallas_call(
        _head_token_kernel,
        out_shape=jax.ShapeDtypeStruct((B, S, c_pad), jnp.float32),
        in_specs=[_vmem_spec()] * 3,
        out_specs=_vmem_spec(),
    )(x, w_t, b)
    return out[:, :, :num_classes]


# One trace per (mode, shapes); whole layer dispatches as a single executable.
head_forward = jax.jit(_head_forward_impl, static_argnames=("mode", "num_classes"))


# ---------------- deterministic parameter construction ------------------------
def make_params(key, d_model, num_classes):
    k1, k2, k3, k4 = jax.random.split(key, 4)
    bound = 1.0 / math.sqrt(d_model)                    # nn.Linear default init range
    w = jax.random.uniform(k1, (num_classes, d_model), jnp.float32, -bound, bound)
    b = jax.random.uniform(k2, (num_classes,), jnp.float32, -bound, bound)
    # nn.LayerNorm default init is ones/zeros; perturb slightly so the affine
    # path is actually exercised by the correctness check.
    g = 1.0 + 0.1 * jax.random.normal(k3, (d_model,), jnp.float32)
    beta = 0.1 * jax.random.normal(k4, (d_model,), jnp.float32)
    return {"mlp_weight": w, "mlp_bias": b, "norm_weight": g, "norm_bias": beta}


# ---------------- pure-JAX reference (for correctness check) ------------------
def reference(x, p, mode):
    if mode == "global":
        h = x.mean(axis=1)
    elif mode == "class":
        m = x.mean(-1, keepdims=True)
        v = ((x - m) ** 2).mean(-1, keepdims=True)
        xn = (x - m) / jnp.sqrt(v + LN_EPS) * p["norm_weight"] + p["norm_bias"]
        h = xn[:, 0]
    else:
        h = x
    return h @ p["mlp_weight"].T + p["mlp_bias"]


if __name__ == "__main__":
    key = jax.random.PRNGKey(0)
    k_x, k_p = jax.random.split(key)

    B, S, NUM_CLASSES = 2, 8, 10
    x = jax.random.normal(k_x, (B, S, D_MODEL), jnp.float32)
    params = make_params(k_p, D_MODEL, NUM_CLASSES)
    prepped, n_cls = prepare_params(params)             # one-time param prep

    for mode in ("global", "class", "none"):
        out = head_forward(x, prepped, mode, n_cls)
        jax.block_until_ready(out)
        ref = reference(x, params, mode)
        np.testing.assert_allclose(np.asarray(out), np.asarray(ref),
                                   atol=2e-5, rtol=2e-5)

    print("KERNEL_OK")
</pallas_src>

<mosaic_0001>
module attributes {stable_mosaic.version = 11 : i64} {
  func.func @_head_global_kernel(%arg0: memref<2x8x32xf32, #tpu.memory_space<vmem>>, %arg1: memref<32x128xf32, #tpu.memory_space<vmem>>, %arg2: memref<1x128xf32, #tpu.memory_space<vmem>>, %arg3: memref<2x128xf32, #tpu.memory_space<vmem>>) attributes {dimension_semantics = [], scalar_prefetch = 0 : i64, scratch_operands = 0 : i64, tpu.core_type = #tpu.core_type<tc>} {
    %c0 = arith.constant 0 : index
    %c0_0 = arith.constant 0 : index
    %c0_1 = arith.constant 0 : index
    %0 = vector.load %arg0[%c0, %c0_0, %c0_1] : memref<2x8x32xf32, #tpu.memory_space<vmem>>, vector<2x8x32xf32>
    %cst = arith.constant dense<0.000000e+00> : vector<2x32xf32>
    %1 = vector.multi_reduction <add>, %0, %cst [1] : vector<2x8x32xf32> to vector<2x32xf32>
    %cst_2 = arith.constant 1.250000e-01 : f32
    %2 = vector.broadcast %cst_2 : f32 to vector<2x32xf32>
    %3 = arith.mulf %1, %2 : vector<2x32xf32>
    %c0_3 = arith.constant 0 : index
    %c0_4 = arith.constant 0 : index
    %4 = vector.load %arg1[%c0_3, %c0_4] : memref<32x128xf32, #tpu.memory_space<vmem>>, vector<32x128xf32>
    %cst_5 = arith.constant dense<0.000000e+00> : vector<2x128xf32>
    %5 = tpu.matmul %3, %4, %cst_5 {dimension_numbers = #tpu.dot_dimension_numbers<[1], [0], [0], [1], [0, 0, 1, 1], [], []>} : vector<2x32xf32>, vector<32x128xf32>, vector<2x128xf32> -> vector<2x128xf32>
    %c0_6 = arith.constant 0 : index
    %c0_7 = arith.constant 0 : index
    %6 = vector.load %arg2[%c0_6, %c0_7] : memref<1x128xf32, #tpu.memory_space<vmem>>, vector<1x128xf32>
    %7 = vector.broadcast %6 : vector<1x128xf32> to vector<2x128xf32>
    %8 = arith.addf %5, %7 : vector<2x128xf32>
    %c0_8 = arith.constant 0 : index
    %c0_9 = arith.constant 0 : index
    %9 = vector.load %arg3[%c0_8, %c0_9] : memref<2x128xf32, #tpu.memory_space<vmem>>, vector<2x128xf32>
    tpu.vector_store %arg3[%c0_8, %c0_9], %8 {strides = array<i32>} : memref<2x128xf32, #tpu.memory_space<vmem>>, vector<2x128xf32>,
    return
  }
}

</mosaic_0001>

<llo_original>
// kernel: _head_forward_impl.1
$region0: #{_head_forward_impl.1}
  #allocation0 [shape = 'u32[]', space=smem, size = 0x4, offset = 0x4, fixed_abs, tag = 'smem constant byte address 0x4 - core index']
  #allocation1 [shape = 'u32[144,128]{1,0:T(1,128)}', space=vmem, size = 0x12000, scoped, tag = 'internal scratch']
  %s0 = inlined_call_operand.hbm [shape: f32[2,8,32], index: 0, kind: input, shape index: {}]
  %s1 = inlined_call_operand.hbm [shape: f32[32,128], index: 1, kind: input, shape index: {}]
  %s2 = inlined_call_operand.vmem [shape: f32[1,128], index: 2, kind: input, shape index: {}]
  %s3 = inlined_call_operand.hbm [shape: f32[2,128], index: 3, kind: output, shape index: {}]
  %s4 = sld [smem:[#allocation0]]
  $region30: #{_head_forward_impl.1} parent=0
    _
  %s6 = ssub.s32 1, %s4
  %s7 = scalar_select 0, %s6, %s4
  $region1: #{_head_forward_impl.1} parent=0
    #allocation2 [shape = 'u8[8192]{0}', space=vmem, size = 0x2000, scoped, tag = 'input window, operand 0, single buffered']
    #allocation3 [shape = 's32[1]{0}', space=sflag, size = 0x4, scoped, tag = 'scoped memory for _head_forward_impl.1']
    #allocation4 [shape = 's32[1]{0}', space=sflag, size = 0x4, scoped, tag = 'scoped memory for _head_forward_impl.1']
    #allocation5 [shape = 'u8[16384]{0}', space=vmem, size = 0x4000, scoped, tag = 'input window, operand 1, single buffered']
    #allocation6 [shape = 's32[1]{0}', space=sflag, size = 0x4, scoped, tag = 'scoped memory for _head_forward_impl.1']
    #allocation7 [shape = 'u8[1024]{0}', space=vmem, size = 0x400, scoped, tag = 'output window, operand 0, single buffered']
    %8 = vsyncpa [#allocation3], 0
    %9 = vsyncpa [#allocation6], 0
    %10 = vsyncpa [#allocation4], 0
    // Predicated region
    $region2: #{_head_forward_impl.1} parent=1 // pred_check
      _
    $region3: #{_head_forward_impl.1} parent=1 // pred_check_branch
      %12 = sbr.rel (0) target = $region5
    $region4: #{_head_forward_impl.1} parent=1 // pred_region
      %s14 = ssub.s32 256, 256
      %15 = vsyncadd [#allocation3], %s14
      %s16 = sshll.u32 [#allocation2], 4
      %s17 = int_to_ptr.vmem [resolvable:$true] %s16
      %22 = dma.hbm_to_vmem [thread:$0]  %s0, 256, %s17, [#allocation3], 128, 128, 8
    $region5: #{_head_forward_impl.1} parent=1 // pred_fallthru
      _
    // Predicated region
    $region6: #{_head_forward_impl.1} parent=1 // pred_check
      _
    $region7: #{_head_forward_impl.1} parent=1 // pred_check_branch
      %24 = sbr.rel (0) target = $region9
    $region8: #{_head_forward_impl.1} parent=1 // pred_region
      %s26 = ssub.s32 512, 512
      %27 = vsyncadd [#allocation6], %s26
      %s28 = sshll.u32 [#allocation5], 4
      %s29 = int_to_ptr.vmem [resolvable:$true] %s28
      %34 = dma.hbm_to_vmem [thread:$0]  %s1, 512, %s29, [#allocation6], 128, 128, 8
    $region9: #{_head_forward_impl.1} parent=1 // pred_fallthru
      _
    // Predicated region
    $region10: #{_head_forward_impl.1} parent=1 // pred_check
      _
    $region11: #{_head_forward_impl.1} parent=1 // pred_check_branch
      %36 = sbr.rel (0) target = $region13
    $region12: #{_head_forward_impl.1} parent=1 // pred_region
      _
    $region13: #{_head_forward_impl.1} parent=1 // pred_fallthru
      _
    // Predicated region
    $region14: #{_head_forward_impl.1} parent=1 // pred_check
      _
    $region15: #{_head_forward_impl.1} parent=1 // pred_check_branch
      %38 = sbr.rel (0) target = $region17
    $region16: #{_head_forward_impl.1} parent=1 // pred_region
      %39 = dma.done [#allocation3], 256
    $region17: #{_head_forward_impl.1} parent=1 // pred_fallthru
      _
    // Predicated region
    $region18: #{_head_forward_impl.1} parent=1 // pred_check
      _
    $region19: #{_head_forward_impl.1} parent=1 // pred_check_branch
      %41 = sbr.rel (0) target = $region21
    $region20: #{_head_forward_impl.1} parent=1 // pred_region
      %42 = dma.done [#allocation6], 512
    $region21: #{_head_forward_impl.1} parent=1 // pred_fallthru
      _
    %v43 = vld [vmem:[#allocation2] sm:$0xff]
    %v44 = vld [vmem:[#allocation2 + $0x8] sm:$0xff]
    %vm45 = vcmask 261120
    %v46 = vsel %vm45, %v43, 0.0
    %v47 = vrot.slane %v46, 4
    %v48 = vadd.f32 %v46, %v47
    %v49 = vrot.slane %v48, 2
    %v50 = vadd.f32 %v48, %v49
    %v51 = vrot.slane %v50, 1
    %v52 = vadd.f32 %v50, %v51
    %v53 = vsel %vm45, %v44, 0.0
    %v54 = vrot.slane %v53, 4
    %v55 = vadd.f32 %v53, %v54
    %v56 = vrot.slane %v55, 2
    %v57 = vadd.f32 %v55, %v56
    %v58 = vrot.slane %v57, 1
    %v59 = vadd.f32 %v57, %v58
    %v60 = vmul.f32 %v52, 0.125
    %v61 = vmul.f32 %v59, 0.125
    %v62 = vld [vmem:[#allocation5] sm:$0xff]
    %v63 = vld [vmem:[#allocation5 + $0x8] sm:$0xff]
    %v64 = vld [vmem:[#allocation5 + $0x10] sm:$0xff]
    %v65 = vld [vmem:[#allocation5 + $0x18] sm:$0xff]
    %v66 = vld [vmem:[%s2] sm:$0x1]
    %v68 = vlaneseq
    %v69 = vshrl.u32 %v68, 7
    %v70 = vsub.s32 0, %v69
    %v71 = vrot.slane %v66, %v70
    %vm75 = vcmask 1041409
    %v76 = vsel %vm75, %v61, %v60
    %v77 = vsel %vm45, %v76, 0
    %79 = vmatprep.subr.mxu0 0.0
    %80 = vmatpush1.msra.mxu0 %v62
    %81 = vmatprep.subr.mxu0 0.0
    %82 = vmatpush1.msra.mxu0 %v63
    %83 = vmatprep.subr.mxu0 0.0
    %84 = vmatpush1.msra.mxu0 %v64
    %85 = vmatprep.subr.mxu0 0.0
    %86 = vmatpush1.msra.mxu0 %v65
    %87 = vmatprep.subr.mxu0 0.0
    %88 = vmatpush1.msra.mxu0 0.0
    %89 = vmatprep.subr.mxu0 0.0
    %90 = vmatpush1.msra.mxu0 0.0
    %91 = vmatprep.subr.mxu0 0.0
    %92 = vmatpush1.msra.mxu0 0.0
    %93 = vmatprep.subr.mxu0 0.0
    %94 = vmatpush1.msra.mxu0 0.0
    %95 = vmatprep.subr.mxu0 0.0
    %96 = vmatpush1.msra.mxu0 0.0
    %97 = vmatprep.subr.mxu0 0.0
    %98 = vmatpush1.msra.mxu0 0.0
    %99 = vmatprep.subr.mxu0 0.0
    %100 = vmatpush1.msra.mxu0 0.0
    %101 = vmatprep.subr.mxu0 0.0
    %102 = vmatpush1.msra.mxu0 0.0
    %103 = vmatprep.subr.mxu0 0.0
    %104 = vmatpush1.msra.mxu0 0.0
    %105 = vmatprep.subr.mxu0 0.0
    %106 = vmatpush1.msra.mxu0 0.0
    %107 = vmatprep.subr.mxu0 0.0
    %108 = vmatpush1.msra.mxu0 0.0
    %109 = vmatprep.subr.mxu0 0.0
    %110 = vmatpush1.msra.mxu0 0.0
    %111 = vmatprep.subr.mxu0 0.0
    %112 = vmatpush1.msra.mxu0 0.0
    %113 = vmatprep.subr.mxu0 0.0
    %114 = vmatpush1.msra.mxu0 0.0
    %115 = vmatprep.subr.mxu0 0.0
    %116 = vmatpush1.msra.mxu0 0.0
    %117 = vmatprep.subr.mxu0 0.0
    %118 = vmatpush1.msra.mxu0 0.0
    %119 = vmatprep.subr.mxu0 0.0
    %120 = vmatpush1.msra.mxu0 0.0
    %121 = vmatprep.subr.mxu0 0.0
    %122 = vmatpush1.msra.mxu0 0.0
    %123 = vmatprep.subr.mxu0 0.0
    %124 = vmatpush1.msra.mxu0 0.0
    %125 = vmatprep.subr.mxu0 0.0
    %126 = vmatpush1.msra.mxu0 0.0
    %127 = vmatprep.subr.mxu0 0.0
    %128 = vmatpush1.msra.mxu0 0.0
    %129 = vmatprep.subr.mxu0 0.0
    %130 = vmatpush1.msra.mxu0 0.0
    %131 = vmatprep.subr.mxu0 0.0
    %132 = vmatpush1.msra.mxu0 0.0
    %133 = vmatprep.subr.mxu0 0.0
    %134 = vmatpush1.msra.mxu0 0.0
    %135 = vmatprep.subr.mxu0 0.0
    %136 = vmatpush1.msra.mxu0 0.0
    %137 = vmatprep.subr.mxu0 0.0
    %138 = vmatpush1.msra.mxu0 0.0
    %139 = vmatprep.subr.mxu0 0.0
    %140 = vmatpush1.msra.mxu0 0.0
    %141 = vmatprep.subr.mxu0 0.0
    %142 = vmatpush1.msra.mxu0 0.0
    %143 = vmatprep.mubr.f32.mxu0 0.0
    %144 = vmatmul.mubr.f32.gmra.mrb[0].mxu0 %v77
    %v145 = vpop.f32.mrb[0].mxu0
    %v146 = vadd.f32 %v71, %v145
    %v147 = vpop.f32.mrb[0].mxu0
    %148 = vdwg.mxu0
    %149 = vst [vmem:[#allocation7] sm:$0x3] %v146
    // Predicated region
    $region22: #{_head_forward_impl.1} parent=1 // pred_check
      _
    $region23: #{_head_forward_impl.1} parent=1 // pred_check_branch
      %151 = sbr.rel (0) target = $region25
    $region24: #{_head_forward_impl.1} parent=1 // pred_region
      %s153 = ssub.s32 32, 32
      %154 = vsyncadd [#allocation4], %s153
      %s156 = sshll.u32 [#allocation7], 4
      %s157 = int_to_ptr.vmem [resolvable:$true] %s156
      %159 = dma.vmem_to_hbm [thread:$0]  %s157, 32, %s3, [#allocation4]
    $region25: #{_head_forward_impl.1} parent=1 // pred_fallthru
      _
    // Predicated region
    $region26: #{_head_forward_impl.1} parent=1 // pred_check
      _
    $region27: #{_head_forward_impl.1} parent=1 // pred_check_branch
      %161 = sbr.rel (0) target = $region29
    $region28: #{_head_forward_impl.1} parent=1 // pred_region
      %162 = dma.done [#allocation4], 32
    $region29: #{_head_forward_impl.1} parent=1 // pred_fallthru
      _
    %163 = vsyncpa [#allocation3], 1
    %164 = vsyncpa [#allocation6], 1
    %165 = vsyncpa [#allocation4], 1

</llo_original>
